<compile_context>
chip_gen: v7x
topology: tpu7x:2x2x1
jax: 0.10.0
libtpu: 0.0.40
codegen_flags: <defaults>
</compile_context>

<pallas_src>
import functools

import jax
import jax.numpy as jnp
from jax import lax
from jax.experimental import pallas as pl
from jax.experimental.pallas import tpu as pltpu


def _round_up(v, m):
    return ((v + m - 1) // m) * m


# Measured tile-size efficiency (fraction of HBM roofline) used as a proxy
# when trading padding waste against per-step efficiency.
_TILE_EFF = {128: 0.29, 256: 0.63, 384: 0.75, 512: 0.85}


def _choose_tile(n):
    """Pick a (tile, padded_n) pair minimizing padded-bytes / efficiency."""
    n128 = _round_up(max(n, 1), 128)
    best = None
    for t in (512, 384, 256, 128):
        n_pad = _round_up(n128, t)
        cost = (n_pad * n_pad) / _TILE_EFF[t]
        key = (cost, -t)
        if best is None or key < best[0]:
            best = (key, t, n_pad)
    return best[1], best[2]


def _pad2(a, rows, cols, dtype):
    """Cast and zero-pad a 2-D array; skips the pad when already aligned."""
    r, c = a.shape
    a = a.astype(dtype)
    if r == rows and c == cols:
        return a
    return jnp.pad(a, ((0, rows - r), (0, cols - c)))


def _vmem_limit_bytes():
    """Per-generation VMEM budget (conservative on v7x's 64 MiB)."""
    try:
        cap = int(pltpu.get_tpu_info().vmem_capacity_bytes)
    except Exception:
        cap = 64 * 1024 * 1024
    if cap >= 96 * 1024 * 1024:      # v5e / v6e: 128 MiB physical
        return int(cap * 0.75)       # ~96 MiB
    return int(cap * 0.625)          # v7x 64 MiB -> ~40 MiB


# --------------------------------------------------------------------------
# Pass 1: projection  xw_in = 0.5 * x @ W_in,  xw_out = 0.5 * x @ W_out
# --------------------------------------------------------------------------
def _proj_kernel(x_ref, w_in_ref, w_out_ref, xw_in_ref, xw_out_ref):
    x = x_ref[...]
    xw_in_ref[...] = (0.5 * jnp.dot(
        x, w_in_ref[...], preferred_element_type=jnp.float32)
    ).astype(xw_in_ref.dtype)
    xw_out_ref[...] = (0.5 * jnp.dot(
        x, w_out_ref[...], preferred_element_type=jnp.float32)
    ).astype(xw_out_ref.dtype)


# --------------------------------------------------------------------------
# Pass 2a (preferred): fused single-read aggregation.
#   adj tile A = adj[i,k]:
#     out[i_rows] += A   @ xw_in[k_rows]
#     out[k_rows] += A^T @ xw_out[i_rows]
#   xw_in / xw_out / out are full-array VMEM-resident (constant index maps).
# --------------------------------------------------------------------------
def _fused_agg_kernel(adj_ref, xw_in_ref, xw_out_ref, out_ref, *, tile):
    i = pl.program_id(0)
    k = pl.program_id(1)

    @pl.when((i == 0) & (k == 0))
    def _():
        out_ref[...] = jnp.zeros_like(out_ref)

    a = adj_ref[...]
    row_i = pl.multiple_of(i * tile, tile)
    row_k = pl.multiple_of(k * tile, tile)

    # out[i_block] += adj[i,k] @ xw_in[k_block]
    out_ref[pl.ds(row_i, tile), :] += jnp.dot(
        a, xw_in_ref[pl.ds(row_k, tile), :],
        preferred_element_type=jnp.float32)

    # out[k_block] += adj[i,k]^T @ xw_out[i_block]  (transposed contraction,
    # lowers to a transposed-LHS MXU matmul; no materialized transpose)
    out_ref[pl.ds(row_k, tile), :] += lax.dot_general(
        a, xw_out_ref[pl.ds(row_i, tile), :],
        dimension_numbers=(((0,), (0,)), ((), ())),
        preferred_element_type=jnp.float32)


# --------------------------------------------------------------------------
# Pass 2b (fallback for very large n): two-stream row/col aggregation with a
# per-row-tile f32 accumulator (adj is read twice, xw re-streamed per K tile).
# --------------------------------------------------------------------------
def _split_agg_kernel(adj_row_ref, adj_col_ref, xw_in_ref, xw_out_ref,
                      out_ref, acc_ref):
    k = pl.program_id(1)

    @pl.when(k == 0)
    def _():
        acc_ref[...] = jnp.zeros_like(acc_ref)

    # Accumulate each MXU result directly into the scratch (one live tile).
    acc_ref[...] += jnp.dot(adj_row_ref[...], xw_in_ref[...],
                            preferred_element_type=jnp.float32)
    acc_ref[...] += lax.dot_general(
        adj_col_ref[...], xw_out_ref[...],
        dimension_numbers=(((0,), (0,)), ((), ())),
        preferred_element_type=jnp.float32)

    @pl.when(k == pl.num_programs(1) - 1)
    def _():
        out_ref[...] = acc_ref[...].astype(out_ref.dtype)


# --------------------------------------------------------------------------
# Wrapper
# --------------------------------------------------------------------------
def directed_graph_convolution(x, adj, w_in, w_out, *, use_bf16=False,
                               force_streaming=False):
    n, in_features = x.shape
    out_features = w_in.shape[1]
    assert adj.shape == (n, n)
    assert w_in.shape == (in_features, out_features)
    assert w_out.shape == (in_features, out_features)

    compute_dtype = jnp.bfloat16 if use_bf16 else jnp.float32
    isz = jnp.dtype(compute_dtype).itemsize

    vmem_limit = _vmem_limit_bytes()

    tile, n_p = _choose_tile(n)
    in_p = _round_up(in_features, 128)
    out_p = _round_up(out_features, 128)

    x_p = _pad2(x, n_p, in_p, compute_dtype)
    adj_p = _pad2(adj, n_p, n_p, compute_dtype)
    w_in_p = _pad2(w_in, in_p, out_p, compute_dtype)
    w_out_p = _pad2(w_out, in_p, out_p, compute_dtype)

    # ---- Pass 1: projection (row-tiled, weights resident via constant map) --
    # Note: for extremely wide features on v7x, the (in_p, out_p) weight
    # blocks could additionally be tiled along K/N; not needed at these sizes.
    tm_proj = tile
    xw_in, xw_out = pl.pallas_call(
        _proj_kernel,
        out_shape=(jax.ShapeDtypeStruct((n_p, out_p), compute_dtype),
                   jax.ShapeDtypeStruct((n_p, out_p), compute_dtype)),
        grid_spec=pltpu.PrefetchScalarGridSpec(
            num_scalar_prefetch=0,
            grid=(n_p // tm_proj,),
            in_specs=[
                pl.BlockSpec((tm_proj, in_p), lambda i: (i, 0)),
                pl.BlockSpec((in_p, out_p), lambda i: (0, 0)),
                pl.BlockSpec((in_p, out_p), lambda i: (0, 0)),
            ],
            out_specs=[
                pl.BlockSpec((tm_proj, out_p), lambda i: (i, 0)),
                pl.BlockSpec((tm_proj, out_p), lambda i: (i, 0)),
            ],
        ),
        compiler_params=pltpu.CompilerParams(
            dimension_semantics=("parallel",),
            vmem_limit_bytes=vmem_limit,
        ),
    )(x_p, w_in_p, w_out_p)

    n_tiles = n_p // tile

    # Conservative footprint for the fused variant (x2 for every pallas-managed
    # buffer to cover double-buffering), plus a small margin.
    fused_bytes = (2 * tile * tile * isz               # streamed adj tile
                   + 2 * 2 * n_p * out_p * isz         # resident xw_in + xw_out
                   + 2 * n_p * out_p * 4)              # resident f32 output
    use_fused = (not force_streaming) and (fused_bytes + (4 << 20) <= vmem_limit)

    if use_fused:
        out_full = pl.pallas_call(
            functools.partial(_fused_agg_kernel, tile=tile),
            out_shape=jax.ShapeDtypeStruct((n_p, out_p), jnp.float32),
            grid_spec=pltpu.PrefetchScalarGridSpec(
                num_scalar_prefetch=0,
                grid=(n_tiles, n_tiles),
                in_specs=[
                    # adj tile (i, k) -- the only HBM stream.
                    pl.BlockSpec((tile, tile), lambda i, k: (i, k)),
                    # xw halves fully VMEM-resident (constant index -> one DMA).
                    pl.BlockSpec((n_p, out_p), lambda i, k: (0, 0)),
                    pl.BlockSpec((n_p, out_p), lambda i, k: (0, 0)),
                ],
                # Full output accumulator resident; written back once at the end.
                out_specs=pl.BlockSpec((n_p, out_p), lambda i, k: (0, 0)),
            ),
            compiler_params=pltpu.CompilerParams(
                # Output is carried across both grid axes -> both arbitrary.
                dimension_semantics=("arbitrary", "arbitrary"),
                vmem_limit_bytes=vmem_limit,
            ),
        )(adj_p, xw_in, xw_out)
    else:
        # Fallback: adj streamed twice (row + column panels), K-reduction.
        out_full = pl.pallas_call(
            _split_agg_kernel,
            out_shape=jax.ShapeDtypeStruct((n_p, out_p), jnp.float32),
            grid_spec=pltpu.PrefetchScalarGridSpec(
                num_scalar_prefetch=0,
                grid=(n_tiles, n_tiles),
                in_specs=[
                    pl.BlockSpec((tile, tile), lambda i, k: (i, k)),   # adj[i,k]
                    pl.BlockSpec((tile, tile), lambda i, k: (k, i)),   # adj[k,i]
                    pl.BlockSpec((tile, out_p), lambda i, k: (k, 0)),  # xw_in[k]
                    pl.BlockSpec((tile, out_p), lambda i, k: (k, 0)),  # xw_out[k]
                ],
                out_specs=pl.BlockSpec((tile, out_p), lambda i, k: (i, 0)),
                scratch_shapes=[pltpu.VMEM((tile, out_p), jnp.float32)],
            ),
            compiler_params=pltpu.CompilerParams(
                dimension_semantics=("parallel", "arbitrary"),
                vmem_limit_bytes=vmem_limit,
            ),
        )(adj_p, adj_p, xw_in, xw_out)

    return out_full[:n, :out_features].astype(x.dtype)


if __name__ == "__main__":
    # Small deterministic shapes consistent with the module.
    n = 16
    in_features = 32
    out_features = 32

    key = jax.random.PRNGKey(0)
    k_x, k_adj, k_win, k_wout = jax.random.split(key, 4)

    x = jax.random.normal(k_x, (n, in_features), dtype=jnp.float32)
    adj = jax.random.uniform(k_adj, (n, n), dtype=jnp.float32)

    limit = (6.0 / (in_features + out_features)) ** 0.5
    w_in = jax.random.uniform(
        k_win, (in_features, out_features), dtype=jnp.float32,
        minval=-limit, maxval=limit)
    w_out = jax.random.uniform(
        k_wout, (in_features, out_features), dtype=jnp.float32,
        minval=-limit, maxval=limit)

    # Pure-JAX reference of the forward semantics.
    ref = (adj @ (x @ w_in) + adj.T @ (x @ w_out)) / 2.0

    # Primary (fused single-read) path.
    out = jax.block_until_ready(directed_graph_convolution(x, adj, w_in, w_out))
    assert out.shape == (n, out_features)
    assert jnp.allclose(out, ref, atol=1e-4, rtol=1e-4)

    # Streaming fallback path (exercised explicitly for coverage).
    out_stream = jax.block_until_ready(
        directed_graph_convolution(x, adj, w_in, w_out, force_streaming=True))
    assert jnp.allclose(out_stream, ref, atol=1e-4, rtol=1e-4)

    # bf16-streaming variant (f32 accumulation) -- looser tolerance expected.
    out_bf16 = jax.block_until_ready(
        directed_graph_convolution(x, adj, w_in, w_out, use_bf16=True))
    assert jnp.allclose(out_bf16, ref, atol=1e-1, rtol=1e-1)

    print("KERNEL_OK")
</pallas_src>

<mosaic_0001>
module attributes {stable_mosaic.version = 11 : i64} {
  func.func @_proj_kernel(%arg0: i32, %arg1: memref<128x128xf32, #tpu.memory_space<vmem>>, %arg2: memref<128x128xf32, #tpu.memory_space<vmem>>, %arg3: memref<128x128xf32, #tpu.memory_space<vmem>>, %arg4: memref<128x128xf32, #tpu.memory_space<vmem>>, %arg5: memref<128x128xf32, #tpu.memory_space<vmem>>) attributes {dimension_semantics = [#tpu.dimension_semantics<parallel>], iteration_bounds = array<i64: 1>, scalar_prefetch = 0 : i64, scratch_operands = 0 : i64, tpu.core_type = #tpu.core_type<tc>, window_params = [{transform_indices = @transform_0, window_bounds = array<i64: 128, 128>}, {pipeline_mode = #tpu.pipeline_mode<synchronous>, transform_indices = @transform_1, window_bounds = array<i64: 128, 128>}, {pipeline_mode = #tpu.pipeline_mode<synchronous>, transform_indices = @transform_2, window_bounds = array<i64: 128, 128>}, {transform_indices = @transform_3, window_bounds = array<i64: 128, 128>}, {transform_indices = @transform_4, window_bounds = array<i64: 128, 128>}]} {
    %c0 = arith.constant 0 : index
    %c0_0 = arith.constant 0 : index
    %0 = vector.load %arg1[%c0, %c0_0] : memref<128x128xf32, #tpu.memory_space<vmem>>, vector<128x128xf32>
    %c0_1 = arith.constant 0 : index
    %c0_2 = arith.constant 0 : index
    %1 = vector.load %arg2[%c0_1, %c0_2] : memref<128x128xf32, #tpu.memory_space<vmem>>, vector<128x128xf32>
    %cst = arith.constant dense<0.000000e+00> : vector<128x128xf32>
    %2 = tpu.matmul %0, %1, %cst {dimension_numbers = #tpu.dot_dimension_numbers<[1], [0], [0], [1], [0, 0, 1, 1], [], []>} : vector<128x128xf32>, vector<128x128xf32>, vector<128x128xf32> -> vector<128x128xf32>
    %cst_3 = arith.constant 5.000000e-01 : f32
    %3 = vector.broadcast %cst_3 : f32 to vector<128x128xf32>
    %4 = arith.mulf %3, %2 : vector<128x128xf32>
    %c0_4 = arith.constant 0 : index
    %c0_5 = arith.constant 0 : index
    %5 = vector.load %arg4[%c0_4, %c0_5] : memref<128x128xf32, #tpu.memory_space<vmem>>, vector<128x128xf32>
    tpu.vector_store %arg4[%c0_4, %c0_5], %4 {strides = array<i32>} : memref<128x128xf32, #tpu.memory_space<vmem>>, vector<128x128xf32>,
    %c0_6 = arith.constant 0 : index
    %c0_7 = arith.constant 0 : index
    %6 = vector.load %arg3[%c0_6, %c0_7] : memref<128x128xf32, #tpu.memory_space<vmem>>, vector<128x128xf32>
    %cst_8 = arith.constant dense<0.000000e+00> : vector<128x128xf32>
    %7 = tpu.matmul %0, %6, %cst_8 {dimension_numbers = #tpu.dot_dimension_numbers<[1], [0], [0], [1], [0, 0, 1, 1], [], []>} : vector<128x128xf32>, vector<128x128xf32>, vector<128x128xf32> -> vector<128x128xf32>
    %cst_9 = arith.constant 5.000000e-01 : f32
    %8 = vector.broadcast %cst_9 : f32 to vector<128x128xf32>
    %9 = arith.mulf %8, %7 : vector<128x128xf32>
    %c0_10 = arith.constant 0 : index
    %c0_11 = arith.constant 0 : index
    %10 = vector.load %arg5[%c0_10, %c0_11] : memref<128x128xf32, #tpu.memory_space<vmem>>, vector<128x128xf32>
    tpu.vector_store %arg5[%c0_10, %c0_11], %9 {strides = array<i32>} : memref<128x128xf32, #tpu.memory_space<vmem>>, vector<128x128xf32>,
    return
  }
  func.func @transform_0(%arg0: i32) -> (i32, i32) {
    %c0_i32 = arith.constant 0 : i32
    %c0_i32_0 = arith.constant 0 : i32
    return %arg0, %c0_i32 : i32, i32
  }
  func.func @transform_1(%arg0: i32) -> (i32, i32) {
    %c0_i32 = arith.constant 0 : i32
    %c0_i32_0 = arith.constant 0 : i32
    %c0_i32_1 = arith.constant 0 : i32
    return %c0_i32, %c0_i32_0 : i32, i32
  }
  func.func @transform_2(%arg0: i32) -> (i32, i32) {
    %c0_i32 = arith.constant 0 : i32
    %c0_i32_0 = arith.constant 0 : i32
    %c0_i32_1 = arith.constant 0 : i32
    return %c0_i32, %c0_i32_0 : i32, i32
  }
  func.func @transform_3(%arg0: i32) -> (i32, i32) {
    %c0_i32 = arith.constant 0 : i32
    %c0_i32_0 = arith.constant 0 : i32
    return %arg0, %c0_i32 : i32, i32
  }
  func.func @transform_4(%arg0: i32) -> (i32, i32) {
    %c0_i32 = arith.constant 0 : i32
    %c0_i32_0 = arith.constant 0 : i32
    return %arg0, %c0_i32 : i32, i32
  }
}

</mosaic_0001>

<llo_original>
// kernel: tpu_custom_call.1
$region0: #{tpu_custom_call.1}
  #allocation0 [shape = 'u32[]', space=smem, size = 0x4, offset = 0x4, fixed_abs, tag = 'smem constant byte address 0x4 - core index']
  #allocation1 [shape = 'u32[144,128]{1,0:T(1,128)}', space=vmem, size = 0x12000, scoped, tag = 'internal scratch']
  %s0 = inlined_call_operand.hbm [shape: f32[128,128], index: 0, kind: input, shape index: {}]
  %s1 = inlined_call_operand.hbm [shape: f32[128,128], index: 1, kind: input, shape index: {}]
  %s2 = inlined_call_operand.hbm [shape: f32[128,128], index: 2, kind: input, shape index: {}]
  %s3 = inlined_call_operand.hbm [shape: f32[128,128], index: 3, kind: output, shape index: {0}]
  %s4 = inlined_call_operand.hbm [shape: f32[128,128], index: 4, kind: output, shape index: {1}]
  %5 = xla_tuple %s3, %s4
  %s6 = sld [smem:[#allocation0]]
  $region42: #{tpu_custom_call.1} parent=0
    _
  %s8 = ssub.s32 1, %s6
  %s9 = scalar_select 0, %s8, %s6
  $region1: #{tpu_custom_call.1} parent=0
    #allocation2 [shape = 'u8[65536]{0}', space=vmem, size = 0x10000, scoped, tag = 'input window, operand 0, single buffered']
    #allocation3 [shape = 's32[1]{0}', space=sflag, size = 0x4, scoped, tag = 'scoped memory for tpu_custom_call.1']
    #allocation4 [shape = 's32[1]{0}', space=sflag, size = 0x4, scoped, tag = 'scoped memory for tpu_custom_call.1']
    #allocation5 [shape = 'u8[65536]{0}', space=vmem, size = 0x10000, scoped, tag = 'input window, operand 1, single buffered']
    #allocation6 [shape = 's32[1]{0}', space=sflag, size = 0x4, scoped, tag = 'scoped memory for tpu_custom_call.1']
    #allocation7 [shape = 'u8[65536]{0}', space=vmem, size = 0x10000, scoped, tag = 'input window, operand 2, single buffered']
    #allocation8 [shape = 'u8[65536]{0}', space=vmem, size = 0x10000, scoped, tag = 'output window, operand 0, single buffered']
    #allocation9 [shape = 'u8[65536]{0}', space=vmem, size = 0x10000, scoped, tag = 'output window, operand 1, single buffered']
    #allocation10 [shape = 's32[1]{0}', space=sflag, size = 0x4, scoped, tag = 'scoped memory for tpu_custom_call.1']
    %10 = vsyncpa [#allocation3], 0
    %11 = vsyncpa [#allocation6], 0
    %12 = vsyncpa [#allocation4], 0
    %13 = vsyncpa [#allocation10], 0
    // Predicated region
    $region2: #{tpu_custom_call.1} parent=1 // pred_check
      _
    $region3: #{tpu_custom_call.1} parent=1 // pred_check_branch
      %15 = sbr.rel (0) target = $region5
    $region4: #{tpu_custom_call.1} parent=1 // pred_region
      %s17 = ssub.s32 2048, 2048
      %18 = vsyncadd [#allocation3], %s17
      %s19 = sshll.u32 [#allocation2], 4
      %s20 = int_to_ptr.vmem [resolvable:$true] %s19
      %25 = dma.hbm_to_vmem [thread:$0]  %s0, 2048, %s20, [#allocation3], 128, 128, 8
    $region5: #{tpu_custom_call.1} parent=1 // pred_fallthru
      _
    // Predicated region
    $region6: #{tpu_custom_call.1} parent=1 // pred_check
      _
    $region7: #{tpu_custom_call.1} parent=1 // pred_check_branch
      %27 = sbr.rel (0) target = $region9
    $region8: #{tpu_custom_call.1} parent=1 // pred_region
      %s29 = ssub.s32 2048, 2048
      %30 = vsyncadd [#allocation6], %s29
      %s31 = sshll.u32 [#allocation5], 4
      %s32 = int_to_ptr.vmem [resolvable:$true] %s31
      %37 = dma.hbm_to_vmem [thread:$0]  %s1, 2048, %s32, [#allocation6], 128, 128, 8
    $region9: #{tpu_custom_call.1} parent=1 // pred_fallthru
      _
    // Predicated region
    $region10: #{tpu_custom_call.1} parent=1 // pred_check
      _
    $region11: #{tpu_custom_call.1} parent=1 // pred_check_branch
      %39 = sbr.rel (0) target = $region13
    $region12: #{tpu_custom_call.1} parent=1 // pred_region
      %s41 = ssub.s32 2048, 2048
      %42 = vsyncadd [#allocation6], %s41
      %s43 = sshll.u32 [#allocation7], 4
      %s44 = int_to_ptr.vmem [resolvable:$true] %s43
      %49 = dma.hbm_to_vmem [thread:$0]  %s2, 2048, %s44, [#allocation6], 128, 128, 8
    $region13: #{tpu_custom_call.1} parent=1 // pred_fallthru
      _
    // Predicated region
    $region14: #{tpu_custom_call.1} parent=1 // pred_check
      _
    $region15: #{tpu_custom_call.1} parent=1 // pred_check_branch
      %51 = sbr.rel (0) target = $region17
    $region16: #{tpu_custom_call.1} parent=1 // pred_region
      %52 = dma.done [#allocation3], 2048
    $region17: #{tpu_custom_call.1} parent=1 // pred_fallthru
      _
    // Predicated region
    $region18: #{tpu_custom_call.1} parent=1 // pred_check
      _
    $region19: #{tpu_custom_call.1} parent=1 // pred_check_branch
      %54 = sbr.rel (0) target = $region21
    $region20: #{tpu_custom_call.1} parent=1 // pred_region
      %55 = dma.done [#allocation6], 2048
    $region21: #{tpu_custom_call.1} parent=1 // pred_fallthru
      _
    // Predicated region
    $region22: #{tpu_custom_call.1} parent=1 // pred_check
      _
    $region23: #{tpu_custom_call.1} parent=1 // pred_check_branch
      %57 = sbr.rel (0) target = $region25
    $region24: #{tpu_custom_call.1} parent=1 // pred_region
      %58 = dma.done [#allocation6], 2048
    $region25: #{tpu_custom_call.1} parent=1 // pred_fallthru
      _
    %v59 = vld [vmem:[#allocation2] sm:$0xff]
    %v60 = vld [vmem:[#allocation2 + $0x8] sm:$0xff]
    %v61 = vld [vmem:[#allocation2 + $0x10] sm:$0xff]
    %v62 = vld [vmem:[#allocation2 + $0x18] sm:$0xff]
    %v63 = vld [vmem:[#allocation2 + $0x20] sm:$0xff]
    %v64 = vld [vmem:[#allocation2 + $0x28] sm:$0xff]
    %v65 = vld [vmem:[#allocation2 + $0x30] sm:$0xff]
    %v66 = vld [vmem:[#allocation2 + $0x38] sm:$0xff]
    %v67 = vld [vmem:[#allocation2 + $0x40] sm:$0xff]
    %v68 = vld [vmem:[#allocation2 + $0x48] sm:$0xff]
    %v69 = vld [vmem:[#allocation2 + $0x50] sm:$0xff]
    %v70 = vld [vmem:[#allocation2 + $0x58] sm:$0xff]
    %v71 = vld [vmem:[#allocation2 + $0x60] sm:$0xff]
    %v72 = vld [vmem:[#allocation2 + $0x68] sm:$0xff]
    %v73 = vld [vmem:[#allocation2 + $0x70] sm:$0xff]
    %v74 = vld [vmem:[#allocation2 + $0x78] sm:$0xff]
    %v75 = vld [vmem:[#allocation5] sm:$0xff]
    %v76 = vld [vmem:[#allocation5 + $0x8] sm:$0xff]
    %v77 = vld [vmem:[#allocation5 + $0x10] sm:$0xff]
    %v78 = vld [vmem:[#allocation5 + $0x18] sm:$0xff]
    %v79 = vld [vmem:[#allocation5 + $0x20] sm:$0xff]
    %v80 = vld [vmem:[#allocation5 + $0x28] sm:$0xff]
    %v81 = vld [vmem:[#allocation5 + $0x30] sm:$0xff]
    %v82 = vld [vmem:[#allocation5 + $0x38] sm:$0xff]
    %v83 = vld [vmem:[#allocation5 + $0x40] sm:$0xff]
    %v84 = vld [vmem:[#allocation5 + $0x48] sm:$0xff]
    %v85 = vld [vmem:[#allocation5 + $0x50] sm:$0xff]
    %v86 = vld [vmem:[#allocation5 + $0x58] sm:$0xff]
    %v87 = vld [vmem:[#allocation5 + $0x60] sm:$0xff]
    %v88 = vld [vmem:[#allocation5 + $0x68] sm:$0xff]
    %v89 = vld [vmem:[#allocation5 + $0x70] sm:$0xff]
    %v90 = vld [vmem:[#allocation5 + $0x78] sm:$0xff]
    %91 = vmatprep.subr.mxu0 0.0
    %92 = vmatpush1.msra.mxu0 %v75
    %93 = vmatprep.subr.mxu0 0.0
    %94 = vmatpush1.msra.mxu0 %v76
    %95 = vmatprep.subr.mxu0 0.0
    %96 = vmatpush1.msra.mxu0 %v77
    %97 = vmatprep.subr.mxu0 0.0
    %98 = vmatpush1.msra.mxu0 %v78
    %99 = vmatprep.subr.mxu0 0.0
    %100 = vmatpush1.msra.mxu0 %v79
    %101 = vmatprep.subr.mxu0 0.0
    %102 = vmatpush1.msra.mxu0 %v80
    %103 = vmatprep.subr.mxu0 0.0
    %104 = vmatpush1.msra.mxu0 %v81
    %105 = vmatprep.subr.mxu0 0.0
    %106 = vmatpush1.msra.mxu0 %v82
    %107 = vmatprep.subr.mxu0 0.0
    %108 = vmatpush1.msra.mxu0 %v83
    %109 = vmatprep.subr.mxu0 0.0
    %110 = vmatpush1.msra.mxu0 %v84
    %111 = vmatprep.subr.mxu0 0.0
    %112 = vmatpush1.msra.mxu0 %v85
    %113 = vmatprep.subr.mxu0 0.0
    %114 = vmatpush1.msra.mxu0 %v86
    %115 = vmatprep.subr.mxu0 0.0
    %116 = vmatpush1.msra.mxu0 %v87
    %117 = vmatprep.subr.mxu0 0.0
    %118 = vmatpush1.msra.mxu0 %v88
    %119 = vmatprep.subr.mxu0 0.0
    %120 = vmatpush1.msra.mxu0 %v89
    %121 = vmatprep.subr.mxu0 0.0
    %122 = vmatpush1.msra.mxu0 %v90
    %123 = vmatprep.subr.mxu0 0.0
    %124 = vmatpush1.msra.mxu0 0.0
    %125 = vmatprep.subr.mxu0 0.0
    %126 = vmatpush1.msra.mxu0 0.0
    %127 = vmatprep.subr.mxu0 0.0
    %128 = vmatpush1.msra.mxu0 0.0
    %129 = vmatprep.subr.mxu0 0.0
    %130 = vmatpush1.msra.mxu0 0.0
    %131 = vmatprep.subr.mxu0 0.0
    %132 = vmatpush1.msra.mxu0 0.0
    %133 = vmatprep.subr.mxu0 0.0
    %134 = vmatpush1.msra.mxu0 0.0
    %135 = vmatprep.subr.mxu0 0.0
    %136 = vmatpush1.msra.mxu0 0.0
    %137 = vmatprep.subr.mxu0 0.0
    %138 = vmatpush1.msra.mxu0 0.0
    %139 = vmatprep.subr.mxu0 0.0
    %140 = vmatpush1.msra.mxu0 0.0
    %141 = vmatprep.subr.mxu0 0.0
    %142 = vmatpush1.msra.mxu0 0.0
    %143 = vmatprep.subr.mxu0 0.0
    %144 = vmatpush1.msra.mxu0 0.0
    %145 = vmatprep.subr.mxu0 0.0
    %146 = vmatpush1.msra.mxu0 0.0
    %147 = vmatprep.subr.mxu0 0.0
    %148 = vmatpush1.msra.mxu0 0.0
    %149 = vmatprep.subr.mxu0 0.0
    %150 = vmatpush1.msra.mxu0 0.0
    %151 = vmatprep.subr.mxu0 0.0
    %152 = vmatpush1.msra.mxu0 0.0
    %153 = vmatprep.subr.mxu0 0.0
    %154 = vmatpush1.msra.mxu0 0.0
    %155 = vmatprep.mubr.f32.mxu0 0.0
    %156 = vmatmul.mubr.f32.gmra.mrb[0].mxu0 %v59
    %v157 = vpop.f32.mrb[0].mxu0
    %v158 = vadd.f32 0.0, %v157
    %v159 = vpop.f32.mrb[0].mxu0
    %160 = vmatprep.mubr.f32.mxu0 0.0
    %161 = vmatmul.mubr.f32.gmra.mrb[0].mxu0 %v60
    %v162 = vpop.f32.mrb[0].mxu0
    %v163 = vadd.f32 0.0, %v162
    %v164 = vpop.f32.mrb[0].mxu0
    %165 = vmatprep.mubr.f32.mxu0 0.0
    %166 = vmatmul.mubr.f32.gmra.mrb[0].mxu0 %v61
    %v167 = vpop.f32.mrb[0].mxu0
    %v168 = vadd.f32 0.0, %v167
    %v169 = vpop.f32.mrb[0].mxu0
    %170 = vmatprep.mubr.f32.mxu0 0.0
    %171 = vmatmul.mubr.f32.gmra.mrb[0].mxu0 %v62
    %v172 = vpop.f32.mrb[0].mxu0
    %v173 = vadd.f32 0.0, %v172
    %v174 = vpop.f32.mrb[0].mxu0
    %175 = vmatprep.mubr.f32.mxu0 0.0
    %176 = vmatmul.mubr.f32.gmra.mrb[0].mxu0 %v63
    %v177 = vpop.f32.mrb[0].mxu0
    %v178 = vadd.f32 0.0, %v177
    %v179 = vpop.f32.mrb[0].mxu0
    %180 = vmatprep.mubr.f32.mxu0 0.0
    %181 = vmatmul.mubr.f32.gmra.mrb[0].mxu0 %v64
    %v182 = vpop.f32.mrb[0].mxu0
    %v183 = vadd.f32 0.0, %v182
    %v184 = vpop.f32.mrb[0].mxu0
    %185 = vmatprep.mubr.f32.mxu0 0.0
    %186 = vmatmul.mubr.f32.gmra.mrb[0].mxu0 %v65
    %v187 = vpop.f32.mrb[0].mxu0
    %v188 = vadd.f32 0.0, %v187
    %v189 = vpop.f32.mrb[0].mxu0
    %190 = vmatprep.mubr.f32.mxu0 0.0
    %191 = vmatmul.mubr.f32.gmra.mrb[0].mxu0 %v66
    %v192 = vpop.f32.mrb[0].mxu0
    %v193 = vadd.f32 0.0, %v192
    %v194 = vpop.f32.mrb[0].mxu0
    %195 = vmatprep.mubr.f32.mxu0 0.0
    %196 = vmatmul.mubr.f32.gmra.mrb[0].mxu0 %v67
    %v197 = vpop.f32.mrb[0].mxu0
    %v198 = vadd.f32 0.0, %v197
    %v199 = vpop.f32.mrb[0].mxu0
    %200 = vmatprep.mubr.f32.mxu0 0.0
    %201 = vmatmul.mubr.f32.gmra.mrb[0].mxu0 %v68
    %v202 = vpop.f32.mrb[0].mxu0
    %v203 = vadd.f32 0.0, %v202
    %v204 = vpop.f32.mrb[0].mxu0
    %205 = vmatprep.mubr.f32.mxu0 0.0
    %206 = vmatmul.mubr.f32.gmra.mrb[0].mxu0 %v69
    %v207 = vpop.f32.mrb[0].mxu0
    %v208 = vadd.f32 0.0, %v207
    %v209 = vpop.f32.mrb[0].mxu0
    %210 = vmatprep.mubr.f32.mxu0 0.0
    %211 = vmatmul.mubr.f32.gmra.mrb[0].mxu0 %v70
    %v212 = vpop.f32.mrb[0].mxu0
    %v213 = vadd.f32 0.0, %v212
    %v214 = vpop.f32.mrb[0].mxu0
    %215 = vmatprep.mubr.f32.mxu0 0.0
    %216 = vmatmul.mubr.f32.gmra.mrb[0].mxu0 %v71
    %v217 = vpop.f32.mrb[0].mxu0
    %v218 = vadd.f32 0.0, %v217
    %v219 = vpop.f32.mrb[0].mxu0
    %220 = vmatprep.mubr.f32.mxu0 0.0
    %221 = vmatmul.mubr.f32.gmra.mrb[0].mxu0 %v72
    %v222 = vpop.f32.mrb[0].mxu0
    %v223 = vadd.f32 0.0, %v222
    %v224 = vpop.f32.mrb[0].mxu0
    %225 = vmatprep.mubr.f32.mxu0 0.0
    %226 = vmatmul.mubr.f32.gmra.mrb[0].mxu0 %v73
    %v227 = vpop.f32.mrb[0].mxu0
    %v228 = vadd.f32 0.0, %v227
    %v229 = vpop.f32.mrb[0].mxu0
    %230 = vmatprep.mubr.f32.mxu0 0.0
    %231 = vmatmul.mubr.f32.gmra.mrb[0].mxu0 %v74
    %v232 = vpop.f32.mrb[0].mxu0
    %v233 = vadd.f32 0.0, %v232
    %v234 = vpop.f32.mrb[0].mxu0
    %235 = vdwg.mxu0
    %v236 = vmul.f32 %v158, 0.5
    %v237 = vmul.f32 %v163, 0.5
    %v238 = vmul.f32 %v168, 0.5
    %v239 = vmul.f32 %v173, 0.5
    %v240 = vmul.f32 %v178, 0.5
    %v241 = vmul.f32 %v183, 0.5
    %v242 = vmul.f32 %v188, 0.5
    %v243 = vmul.f32 %v193, 0.5
    %v244 = vmul.f32 %v198, 0.5
    %v245 = vmul.f32 %v203, 0.5
    %v246 = vmul.f32 %v208, 0.5
    %v247 = vmul.f32 %v213, 0.5
    %v248 = vmul.f32 %v218, 0.5
    %v249 = vmul.f32 %v223, 0.5
    %v250 = vmul.f32 %v228, 0.5
    %v251 = vmul.f32 %v233, 0.5
    %252 = vst [vmem:[#allocation8] sm:$0xff] %v236
    %253 = vst [vmem:[#allocation8 + $0x8] sm:$0xff] %v237
    %254 = vst [vmem:[#allocation8 + $0x10] sm:$0xff] %v238
    %255 = vst [vmem:[#allocation8 + $0x18] sm:$0xff] %v239
    %256 = vst [vmem:[#allocation8 + $0x20] sm:$0xff] %v240
    %257 = vst [vmem:[#allocation8 + $0x28] sm:$0xff] %v241
    %258 = vst [vmem:[#allocation8 + $0x30] sm:$0xff] %v242
    %259 = vst [vmem:[#allocation8 + $0x38] sm:$0xff] %v243
    %260 = vst [vmem:[#allocation8 + $0x40] sm:$0xff] %v244
    %261 = vst [vmem:[#allocation8 + $0x48] sm:$0xff] %v245
    %262 = vst [vmem:[#allocation8 + $0x50] sm:$0xff] %v246
    %263 = vst [vmem:[#allocation8 + $0x58] sm:$0xff] %v247
    %264 = vst [vmem:[#allocation8 + $0x60] sm:$0xff] %v248
    %265 = vst [vmem:[#allocation8 + $0x68] sm:$0xff] %v249
    %266 = vst [vmem:[#allocation8 + $0x70] sm:$0xff] %v250
    %267 = vst [vmem:[#allocation8 + $0x78] sm:$0xff] %v251
    %v268 = vld [vmem:[#allocation7] sm:$0xff]
    %v269 = vld [vmem:[#allocation7 + $0x8] sm:$0xff]
    %v270 = vld [vmem:[#allocation7 + $0x10] sm:$0xff]
    %v271 = vld [vmem:[#allocation7 + $0x18] sm:$0xff]
    %v272 = vld [vmem:[#allocation7 + $0x20] sm:$0xff]
    %v273 = vld [vmem:[#allocation7 + $0x28] sm:$0xff]
    %v274 = vld [vmem:[#allocation7 + $0x30] sm:$0xff]
    %v275 = vld [vmem:[#allocation7 + $0x38] sm:$0xff]
    %v276 = vld [vmem:[#allocation7 + $0x40] sm:$0xff]
    %v277 = vld [vmem:[#allocation7 + $0x48] sm:$0xff]
    %v278 = vld [vmem:[#allocation7 + $0x50] sm:$0xff]
    %v279 = vld [vmem:[#allocation7 + $0x58] sm:$0xff]
    %v280 = vld [vmem:[#allocation7 + $0x60] sm:$0xff]
    %v281 = vld [vmem:[#allocation7 + $0x68] sm:$0xff]
    %v282 = vld [vmem:[#allocation7 + $0x70] sm:$0xff]
    %v283 = vld [vmem:[#allocation7 + $0x78] sm:$0xff]
    %284 = vmatprep.subr.mxu0 0.0
    %285 = vmatpush1.msra.mxu0 %v268
    %286 = vmatprep.subr.mxu0 0.0
    %287 = vmatpush1.msra.mxu0 %v269
    %288 = vmatprep.subr.mxu0 0.0
    %289 = vmatpush1.msra.mxu0 %v270
    %290 = vmatprep.subr.mxu0 0.0
    %291 = vmatpush1.msra.mxu0 %v271
    %292 = vmatprep.subr.mxu0 0.0
    %293 = vmatpush1.msra.mxu0 %v272
    %294 = vmatprep.subr.mxu0 0.0
    %295 = vmatpush1.msra.mxu0 %v273
    %296 = vmatprep.subr.mxu0 0.0
    %297 = vmatpush1.msra.mxu0 %v274
    %298 = vmatprep.subr.mxu0 0.0
    %299 = vmatpush1.msra.mxu0 %v275
    %300 = vmatprep.subr.mxu0 0.0
    %301 = vmatpush1.msra.mxu0 %v276
    %302 = vmatprep.subr.mxu0 0.0
    %303 = vmatpush1.msra.mxu0 %v277
    %304 = vmatprep.subr.mxu0 0.0
    %305 = vmatpush1.msra.mxu0 %v278
    %306 = vmatprep.subr.mxu0 0.0
    %307 = vmatpush1.msra.mxu0 %v279
    %308 = vmatprep.subr.mxu0 0.0
    %309 = vmatpush1.msra.mxu0 %v280
    %310 = vmatprep.subr.mxu0 0.0
    %311 = vmatpush1.msra.mxu0 %v281
    %312 = vmatprep.subr.mxu0 0.0
    %313 = vmatpush1.msra.mxu0 %v282
    %314 = vmatprep.subr.mxu0 0.0
    %315 = vmatpush1.msra.mxu0 %v283
    %316 = vmatprep.subr.mxu0 0.0
    %317 = vmatpush1.msra.mxu0 0.0
    %318 = vmatprep.subr.mxu0 0.0
    %319 = vmatpush1.msra.mxu0 0.0
    %320 = vmatprep.subr.mxu0 0.0
    %321 = vmatpush1.msra.mxu0 0.0
    %322 = vmatprep.subr.mxu0 0.0
    %323 = vmatpush1.msra.mxu0 0.0
    %324 = vmatprep.subr.mxu0 0.0
    %325 = vmatpush1.msra.mxu0 0.0
    %326 = vmatprep.subr.mxu0 0.0
    %327 = vmatpush1.msra.mxu0 0.0
    %328 = vmatprep.subr.mxu0 0.0
    %329 = vmatpush1.msra.mxu0 0.0
    %330 = vmatprep.subr.mxu0 0.0
    %331 = vmatpush1.msra.mxu0 0.0
    %332 = vmatprep.subr.mxu0 0.0
    %333 = vmatpush1.msra.mxu0 0.0
    %334 = vmatprep.subr.mxu0 0.0
    %335 = vmatpush1.msra.mxu0 0.0
    %336 = vmatprep.subr.mxu0 0.0
    %337 = vmatpush1.msra.mxu0 0.0
    %338 = vmatprep.subr.mxu0 0.0
    %339 = vmatpush1.msra.mxu0 0.0
    %340 = vmatprep.subr.mxu0 0.0
    %341 = vmatpush1.msra.mxu0 0.0
    %342 = vmatprep.subr.mxu0 0.0
    %343 = vmatpush1.msra.mxu0 0.0
    %344 = vmatprep.subr.mxu0 0.0
    %345 = vmatpush1.msra.mxu0 0.0
    %346 = vmatprep.subr.mxu0 0.0
    %347 = vmatpush1.msra.mxu0 0.0
    %348 = vmatprep.mubr.f32.mxu0 0.0
    %349 = vmatmul.mubr.f32.gmra.mrb[0].mxu0 %v59
    %v350 = vpop.f32.mrb[0].mxu0
    %v351 = vadd.f32 0.0, %v350
    %v352 = vpop.f32.mrb[0].mxu0
    %353 = vmatprep.mubr.f32.mxu0 0.0
    %354 = vmatmul.mubr.f32.gmra.mrb[0].mxu0 %v60
    %v355 = vpop.f32.mrb[0].mxu0
    %v356 = vadd.f32 0.0, %v355
    %v357 = vpop.f32.mrb[0].mxu0
    %358 = vmatprep.mubr.f32.mxu0 0.0
    %359 = vmatmul.mubr.f32.gmra.mrb[0].mxu0 %v61
    %v360 = vpop.f32.mrb[0].mxu0
    %v361 = vadd.f32 0.0, %v360
    %v362 = vpop.f32.mrb[0].mxu0
    %363 = vmatprep.mubr.f32.mxu0 0.0
    %364 = vmatmul.mubr.f32.gmra.mrb[0].mxu0 %v62
    %v365 = vpop.f32.mrb[0].mxu0
    %v366 = vadd.f32 0.0, %v365
    %v367 = vpop.f32.mrb[0].mxu0
    %368 = vmatprep.mubr.f32.mxu0 0.0
    %369 = vmatmul.mubr.f32.gmra.mrb[0].mxu0 %v63
    %v370 = vpop.f32.mrb[0].mxu0
    %v371 = vadd.f32 0.0, %v370
    %v372 = vpop.f32.mrb[0].mxu0
    %373 = vmatprep.mubr.f32.mxu0 0.0
    %374 = vmatmul.mubr.f32.gmra.mrb[0].mxu0 %v64
    %v375 = vpop.f32.mrb[0].mxu0
    %v376 = vadd.f32 0.0, %v375
    %v377 = vpop.f32.mrb[0].mxu0
    %378 = vmatprep.mubr.f32.mxu0 0.0
    %379 = vmatmul.mubr.f32.gmra.mrb[0].mxu0 %v65
    %v380 = vpop.f32.mrb[0].mxu0
    %v381 = vadd.f32 0.0, %v380
    %v382 = vpop.f32.mrb[0].mxu0
    %383 = vmatprep.mubr.f32.mxu0 0.0
    %384 = vmatmul.mubr.f32.gmra.mrb[0].mxu0 %v66
    %v385 = vpop.f32.mrb[0].mxu0
    %v386 = vadd.f32 0.0, %v385
    %v387 = vpop.f32.mrb[0].mxu0
    %388 = vmatprep.mubr.f32.mxu0 0.0
    %389 = vmatmul.mubr.f32.gmra.mrb[0].mxu0 %v67
    %v390 = vpop.f32.mrb[0].mxu0
    %v391 = vadd.f32 0.0, %v390
    %v392 = vpop.f32.mrb[0].mxu0
    %393 = vmatprep.mubr.f32.mxu0 0.0
    %394 = vmatmul.mubr.f32.gmra.mrb[0].mxu0 %v68
    %v395 = vpop.f32.mrb[0].mxu0
    %v396 = vadd.f32 0.0, %v395
    %v397 = vpop.f32.mrb[0].mxu0
    %398 = vmatprep.mubr.f32.mxu0 0.0
    %399 = vmatmul.mubr.f32.gmra.mrb[0].mxu0 %v69
    %v400 = vpop.f32.mrb[0].mxu0
    %v401 = vadd.f32 0.0, %v400
    %v402 = vpop.f32.mrb[0].mxu0
    %403 = vmatprep.mubr.f32.mxu0 0.0
    %404 = vmatmul.mubr.f32.gmra.mrb[0].mxu0 %v70
    %v405 = vpop.f32.mrb[0].mxu0
    %v406 = vadd.f32 0.0, %v405
    %v407 = vpop.f32.mrb[0].mxu0
    %408 = vmatprep.mubr.f32.mxu0 0.0
    %409 = vmatmul.mubr.f32.gmra.mrb[0].mxu0 %v71
    %v410 = vpop.f32.mrb[0].mxu0
    %v411 = vadd.f32 0.0, %v410
    %v412 = vpop.f32.mrb[0].mxu0
    %413 = vmatprep.mubr.f32.mxu0 0.0
    %414 = vmatmul.mubr.f32.gmra.mrb[0].mxu0 %v72
    %v415 = vpop.f32.mrb[0].mxu0
    %v416 = vadd.f32 0.0, %v415
    %v417 = vpop.f32.mrb[0].mxu0
    %418 = vmatprep.mubr.f32.mxu0 0.0
    %419 = vmatmul.mubr.f32.gmra.mrb[0].mxu0 %v73
    %v420 = vpop.f32.mrb[0].mxu0
    %v421 = vadd.f32 0.0, %v420
    %v422 = vpop.f32.mrb[0].mxu0
    %423 = vmatprep.mubr.f32.mxu0 0.0
    %424 = vmatmul.mubr.f32.gmra.mrb[0].mxu0 %v74
    %v425 = vpop.f32.mrb[0].mxu0
    %v426 = vadd.f32 0.0, %v425
    %v427 = vpop.f32.mrb[0].mxu0
    %428 = vdwg.mxu0
    %v429 = vmul.f32 %v351, 0.5
    %v430 = vmul.f32 %v356, 0.5
    %v431 = vmul.f32 %v361, 0.5
    %v432 = vmul.f32 %v366, 0.5
    %v433 = vmul.f32 %v371, 0.5
    %v434 = vmul.f32 %v376, 0.5
    %v435 = vmul.f32 %v381, 0.5
    %v436 = vmul.f32 %v386, 0.5
    %v437 = vmul.f32 %v391, 0.5
    %v438 = vmul.f32 %v396, 0.5
    %v439 = vmul.f32 %v401, 0.5
    %v440 = vmul.f32 %v406, 0.5
    %v441 = vmul.f32 %v411, 0.5
    %v442 = vmul.f32 %v416, 0.5
    %v443 = vmul.f32 %v421, 0.5
    %v444 = vmul.f32 %v426, 0.5
    %445 = vst [vmem:[#allocation9] sm:$0xff] %v429
    %446 = vst [vmem:[#allocation9 + $0x8] sm:$0xff] %v430
    %447 = vst [vmem:[#allocation9 + $0x10] sm:$0xff] %v431
    %448 = vst [vmem:[#allocation9 + $0x18] sm:$0xff] %v432
    %449 = vst [vmem:[#allocation9 + $0x20] sm:$0xff] %v433
    %450 = vst [vmem:[#allocation9 + $0x28] sm:$0xff] %v434
    %451 = vst [vmem:[#allocation9 + $0x30] sm:$0xff] %v435
    %452 = vst [vmem:[#allocation9 + $0x38] sm:$0xff] %v436
    %453 = vst [vmem:[#allocation9 + $0x40] sm:$0xff] %v437
    %454 = vst [vmem:[#allocation9 + $0x48] sm:$0xff] %v438
    %455 = vst [vmem:[#allocation9 + $0x50] sm:$0xff] %v439
    %456 = vst [vmem:[#allocation9 + $0x58] sm:$0xff] %v440
    %457 = vst [vmem:[#allocation9 + $0x60] sm:$0xff] %v441
    %458 = vst [vmem:[#allocation9 + $0x68] sm:$0xff] %v442
    %459 = vst [vmem:[#allocation9 + $0x70] sm:$0xff] %v443
    %460 = vst [vmem:[#allocation9 + $0x78] sm:$0xff] %v444
    // Predicated region
    $region26: #{tpu_custom_call.1} parent=1 // pred_check
      _
    $region27: #{tpu_custom_call.1} parent=1 // pred_check_branch
      %462 = sbr.rel (0) target = $region29
    $region28: #{tpu_custom_call.1} parent=1 // pred_region
      %s464 = ssub.s32 2048, 2048
      %465 = vsyncadd [#allocation4], %s464
      %s466 = sshll.u32 [#allocation8], 4
      %s467 = int_to_ptr.vmem [resolvable:$true] %s466
      %472 = dma.vmem_to_hbm [thread:$0]  %s467, 2048, %s3, [#allocation4], 128, 128, 8
    $region29: #{tpu_custom_call.1} parent=1 // pred_fallthru
      _
    // Predicated region
    $region30: #{tpu_custom_call.1} parent=1 // pred_check
      _
    $region31: #{tpu_custom_call.1} parent=1 // pred_check_branch
      %474 = sbr.rel (0) target = $region33
    $region32: #{tpu_custom_call.1} parent=1 // pred_region
      %s476 = ssub.s32 2048, 2048
      %477 = vsyncadd [#allocation10], %s476
      %s478 = sshll.u32 [#allocation9], 4
      %s479 = int_to_ptr.vmem [resolvable:$true] %s478
      %484 = dma.vmem_to_hbm [thread:$0]  %s479, 2048, %s4, [#allocation10], 128, 128, 8
    $region33: #{tpu_custom_call.1} parent=1 // pred_fallthru
      _
    // Predicated region
    $region34: #{tpu_custom_call.1} parent=1 // pred_check
      _
    $region35: #{tpu_custom_call.1} parent=1 // pred_check_branch
      %486 = sbr.rel (0) target = $region37
    $region36: #{tpu_custom_call.1} parent=1 // pred_region
      %487 = dma.done [#allocation4], 2048
    $region37: #{tpu_custom_call.1} parent=1 // pred_fallthru
      _
    // Predicated region
    $region38: #{tpu_custom_call.1} parent=1 // pred_check
      _
    $region39: #{tpu_custom_call.1} parent=1 // pred_check_branch
      %489 = sbr.rel (0) target = $region41
    $region40: #{tpu_custom_call.1} parent=1 // pred_region
      %490 = dma.done [#allocation10], 2048
    $region41: #{tpu_custom_call.1} parent=1 // pred_fallthru
      _
    %491 = vsyncpa [#allocation3], 1
    %492 = vsyncpa [#allocation6], 1
    %493 = vsyncpa [#allocation4], 1
    %494 = vsyncpa [#allocation10], 1

</llo_original>
